<compile_context>
chip_gen: v7x
topology: tpu7x:2x2x1
jax: 0.10.0
libtpu: 0.0.40
codegen_flags: <defaults>
</compile_context>

<pallas_src>
import functools

import jax
import jax.numpy as jnp
import numpy as np
from jax.experimental import pallas as pl
from jax.experimental.pallas import tpu as pltpu


def _conv1d_prelu_kernel(x_ref, w_ref, b_ref, alpha_ref, o_ref):
    # x_ref:     (K*C_in, Lt)   tap planes for one batch / one L tile;
    #                           row r = k*C_in + ci holds x[ci, t*stride + k]
    # w_ref:     (C_out, K*C_in) conv weights, column r = k*C_in + ci
    # b_ref:     (C_out, 1)     bias column
    # alpha_ref: (1, 1) SMEM    shared PReLU slope (torch PReLU default: 1 param)
    # o_ref:     (C_out, Lt)    NCL output block, Lt is a multiple of 128
    n_taps = x_ref.shape[0]

    w_all = w_ref[...]                                    # (C_out, K*C_in), one load
    # Bias-initialised accumulator + K*C_in fully unrolled VPU broadcast FMAs:
    # weight column broadcasts over lanes, tap row broadcasts over sublanes.
    acc = b_ref[...] + w_all[:, 0:1] * x_ref[0:1, :]
    for r in range(1, n_taps):
        acc = acc + w_all[:, r:r + 1] * x_ref[r:r + 1, :]

    alpha = alpha_ref[0, 0]                               # scalar read from SMEM
    o_ref[...] = jnp.where(acc >= 0.0, acc, alpha * acc).astype(o_ref.dtype)


@functools.partial(jax.jit, static_argnames=("kernel_size", "stride"))
def conv_unit_forward(x, weight, bias, alpha, *, kernel_size=5, stride=4):
    """x: (N, C_in, L) f32 -> (N, C_out, L_out) f32  (Conv1d(k=5, s=4) + PReLU)."""
    n, c_in, length = x.shape
    c_out, c_in_w, k = weight.shape
    assert c_in_w == c_in and k == kernel_size
    l_out = (length - k) // stride + 1
    assert l_out >= 1

    # ---- lane-dense tiling over the output length ---------------------------
    l_pad128 = ((l_out + 127) // 128) * 128
    l_tile = min(512, l_pad128)                    # >= 128 and a multiple of 128
    lp = ((l_out + l_tile - 1) // l_tile) * l_tile # padded L_out, multiple of l_tile
    n_ltiles = lp // l_tile

    # ---- tap-plane construction (polyphase + halo plane), fused under jit ---
    shift_max = (k - 1) // stride                  # = 1 for k=5, stride=4
    ltot = stride * (lp + shift_max)               # padded tail is never read for t < L_out
    xp = jnp.pad(x, ((0, 0), (0, 0), (0, ltot - length)))
    xv = xp.reshape(n, c_in, lp + shift_max, stride)       # [n,ci,m,p] = x[n,ci,m*s+p]
    base = jnp.transpose(xv, (0, 3, 1, 2))                 # (N, stride, C_in, lp+shift_max)
    planes = []
    for kk in range(k):
        ph, sh = kk % stride, kk // stride
        planes.append(base[:, ph, :, sh:sh + lp])          # (N, C_in, lp), tap kk
    x_taps = jnp.concatenate(planes, axis=1)               # (N, K*C_in, lp), row = kk*C_in+ci

    w_flat = jnp.transpose(weight, (0, 2, 1)).reshape(c_out, k * c_in)  # col = kk*C_in+ci
    b_col = bias.reshape(c_out, 1).astype(jnp.float32)
    alpha_arr = jnp.asarray(alpha, jnp.float32).reshape(1, 1)

    out_p = pl.pallas_call(
        _conv1d_prelu_kernel,
        out_shape=jax.ShapeDtypeStruct((n, c_out, lp), jnp.float32),
        grid=(n, n_ltiles),
        in_specs=[
            pl.BlockSpec((None, k * c_in, l_tile), lambda b, j: (b, 0, j)),
            pl.BlockSpec((c_out, k * c_in), lambda b, j: (0, 0)),
            pl.BlockSpec((c_out, 1), lambda b, j: (0, 0)),
            pl.BlockSpec(memory_space=pltpu.MemorySpace.SMEM),
        ],
        out_specs=pl.BlockSpec((None, c_out, l_tile), lambda b, j: (b, 0, j)),
        compiler_params=pltpu.CompilerParams(
            dimension_semantics=("parallel", "parallel")),
    )(x_taps, w_flat, b_col, alpha_arr)

    return out_p[:, :, :l_out]                             # (N, C_out, L_out), NCL


def _reference_forward(x, weight, bias, alpha, *, stride=4):
    """Pure-JAX reference (lax conv + PReLU) for correctness check."""
    y = jax.lax.conv_general_dilated(
        x, weight,
        window_strides=(stride,),
        padding="VALID",
        dimension_numbers=("NCH", "OIH", "NCH"),
    )
    y = y + bias.reshape(1, -1, 1)
    return jnp.where(y >= 0.0, y, alpha * y)


if __name__ == "__main__":
    key = jax.random.PRNGKey(0)
    k_x, k_w, k_b = jax.random.split(key, 3)

    N, C_IN, C_OUT, L, K, STRIDE = 2, 4, 4, 16, 5, 4

    x = jax.random.normal(k_x, (N, C_IN, L), dtype=jnp.float32)
    # Deterministic synthetic parameters (shapes match torch Conv1d(4, 4, 5)).
    weight = jax.random.normal(k_w, (C_OUT, C_IN, K), dtype=jnp.float32) * 0.1
    bias = jax.random.normal(k_b, (C_OUT,), dtype=jnp.float32) * 0.1
    alpha = jnp.float32(0.25)  # torch PReLU default: one shared param, init 0.25

    out = conv_unit_forward(x, weight, bias, alpha, kernel_size=K, stride=STRIDE)
    out = jax.block_until_ready(out)

    ref = jax.block_until_ready(_reference_forward(x, weight, bias, alpha, stride=STRIDE))
    assert out.shape == (N, C_OUT, (L - K) // STRIDE + 1)
    assert np.allclose(np.asarray(out), np.asarray(ref), rtol=1e-5, atol=1e-5)

    print("KERNEL_OK")
</pallas_src>

<mosaic_0001>
module attributes {stable_mosaic.version = 11 : i64} {
  func.func @_conv1d_prelu_kernel(%arg0: i32, %arg1: i32, %arg2: memref<1x20x128xf32, #tpu.memory_space<vmem>>, %arg3: memref<4x20xf32, #tpu.memory_space<vmem>>, %arg4: memref<4x1xf32, #tpu.memory_space<vmem>>, %arg5: memref<1x1xf32, #tpu.memory_space<smem>>, %arg6: memref<1x4x128xf32, #tpu.memory_space<vmem>>) attributes {dimension_semantics = [#tpu.dimension_semantics<parallel>, #tpu.dimension_semantics<parallel>], iteration_bounds = array<i64: 2, 1>, scalar_prefetch = 0 : i64, scratch_operands = 0 : i64, tpu.core_type = #tpu.core_type<tc>, window_params = [{transform_indices = @transform_0, window_bounds = array<i64: 1, 20, 128>}, {pipeline_mode = #tpu.pipeline_mode<synchronous>, transform_indices = @transform_1, window_bounds = array<i64: 4, 20>}, {pipeline_mode = #tpu.pipeline_mode<synchronous>, transform_indices = @transform_2, window_bounds = array<i64: 4, 1>}, {transform_indices = @transform_3, window_bounds = array<i64: 1, 1>}, {transform_indices = @transform_4, window_bounds = array<i64: 1, 4, 128>}]} {
    %c0 = arith.constant 0 : index
    %c0_0 = arith.constant 0 : index
    %0 = vector.load %arg3[%c0, %c0_0] : memref<4x20xf32, #tpu.memory_space<vmem>>, vector<4x20xf32>
    %c0_1 = arith.constant 0 : index
    %c0_2 = arith.constant 0 : index
    %1 = vector.load %arg4[%c0_1, %c0_2] : memref<4x1xf32, #tpu.memory_space<vmem>>, vector<4x1xf32>
    %2 = vector.extract_strided_slice %0 {offsets = [0, 0], sizes = [4, 1], strides = [1, 1]} : vector<4x20xf32> to vector<4x1xf32>
    %c0_3 = arith.constant 0 : index
    %c0_4 = arith.constant 0 : index
    %c0_5 = arith.constant 0 : index
    %3 = vector.load %arg2[%c0_3, %c0_4, %c0_5] : memref<1x20x128xf32, #tpu.memory_space<vmem>>, vector<1x1x128xf32>
    %4 = vector.shape_cast %3 : vector<1x1x128xf32> to vector<1x128xf32>
    %5 = vector.broadcast %2 : vector<4x1xf32> to vector<4x128xf32>
    %6 = vector.broadcast %4 : vector<1x128xf32> to vector<4x128xf32>
    %7 = arith.mulf %5, %6 : vector<4x128xf32>
    %8 = vector.broadcast %1 : vector<4x1xf32> to vector<4x128xf32>
    %9 = arith.addf %8, %7 : vector<4x128xf32>
    %10 = vector.extract_strided_slice %0 {offsets = [0, 1], sizes = [4, 1], strides = [1, 1]} : vector<4x20xf32> to vector<4x1xf32>
    %c0_6 = arith.constant 0 : index
    %c1 = arith.constant 1 : index
    %c0_7 = arith.constant 0 : index
    %11 = vector.load %arg2[%c0_6, %c1, %c0_7] : memref<1x20x128xf32, #tpu.memory_space<vmem>>, vector<1x1x128xf32>
    %12 = vector.shape_cast %11 : vector<1x1x128xf32> to vector<1x128xf32>
    %13 = vector.broadcast %10 : vector<4x1xf32> to vector<4x128xf32>
    %14 = vector.broadcast %12 : vector<1x128xf32> to vector<4x128xf32>
    %15 = arith.mulf %13, %14 : vector<4x128xf32>
    %16 = arith.addf %9, %15 : vector<4x128xf32>
    %17 = vector.extract_strided_slice %0 {offsets = [0, 2], sizes = [4, 1], strides = [1, 1]} : vector<4x20xf32> to vector<4x1xf32>
    %c0_8 = arith.constant 0 : index
    %c2 = arith.constant 2 : index
    %c0_9 = arith.constant 0 : index
    %18 = vector.load %arg2[%c0_8, %c2, %c0_9] : memref<1x20x128xf32, #tpu.memory_space<vmem>>, vector<1x1x128xf32>
    %19 = vector.shape_cast %18 : vector<1x1x128xf32> to vector<1x128xf32>
    %20 = vector.broadcast %17 : vector<4x1xf32> to vector<4x128xf32>
    %21 = vector.broadcast %19 : vector<1x128xf32> to vector<4x128xf32>
    %22 = arith.mulf %20, %21 : vector<4x128xf32>
    %23 = arith.addf %16, %22 : vector<4x128xf32>
    %24 = vector.extract_strided_slice %0 {offsets = [0, 3], sizes = [4, 1], strides = [1, 1]} : vector<4x20xf32> to vector<4x1xf32>
    %c0_10 = arith.constant 0 : index
    %c3 = arith.constant 3 : index
    %c0_11 = arith.constant 0 : index
    %25 = vector.load %arg2[%c0_10, %c3, %c0_11] : memref<1x20x128xf32, #tpu.memory_space<vmem>>, vector<1x1x128xf32>
    %26 = vector.shape_cast %25 : vector<1x1x128xf32> to vector<1x128xf32>
    %27 = vector.broadcast %24 : vector<4x1xf32> to vector<4x128xf32>
    %28 = vector.broadcast %26 : vector<1x128xf32> to vector<4x128xf32>
    %29 = arith.mulf %27, %28 : vector<4x128xf32>
    %30 = arith.addf %23, %29 : vector<4x128xf32>
    %31 = vector.extract_strided_slice %0 {offsets = [0, 4], sizes = [4, 1], strides = [1, 1]} : vector<4x20xf32> to vector<4x1xf32>
    %c0_12 = arith.constant 0 : index
    %c4 = arith.constant 4 : index
    %c0_13 = arith.constant 0 : index
    %32 = vector.load %arg2[%c0_12, %c4, %c0_13] : memref<1x20x128xf32, #tpu.memory_space<vmem>>, vector<1x1x128xf32>
    %33 = vector.shape_cast %32 : vector<1x1x128xf32> to vector<1x128xf32>
    %34 = vector.broadcast %31 : vector<4x1xf32> to vector<4x128xf32>
    %35 = vector.broadcast %33 : vector<1x128xf32> to vector<4x128xf32>
    %36 = arith.mulf %34, %35 : vector<4x128xf32>
    %37 = arith.addf %30, %36 : vector<4x128xf32>
    %38 = vector.extract_strided_slice %0 {offsets = [0, 5], sizes = [4, 1], strides = [1, 1]} : vector<4x20xf32> to vector<4x1xf32>
    %c0_14 = arith.constant 0 : index
    %c5 = arith.constant 5 : index
    %c0_15 = arith.constant 0 : index
    %39 = vector.load %arg2[%c0_14, %c5, %c0_15] : memref<1x20x128xf32, #tpu.memory_space<vmem>>, vector<1x1x128xf32>
    %40 = vector.shape_cast %39 : vector<1x1x128xf32> to vector<1x128xf32>
    %41 = vector.broadcast %38 : vector<4x1xf32> to vector<4x128xf32>
    %42 = vector.broadcast %40 : vector<1x128xf32> to vector<4x128xf32>
    %43 = arith.mulf %41, %42 : vector<4x128xf32>
    %44 = arith.addf %37, %43 : vector<4x128xf32>
    %45 = vector.extract_strided_slice %0 {offsets = [0, 6], sizes = [4, 1], strides = [1, 1]} : vector<4x20xf32> to vector<4x1xf32>
    %c0_16 = arith.constant 0 : index
    %c6 = arith.constant 6 : index
    %c0_17 = arith.constant 0 : index
    %46 = vector.load %arg2[%c0_16, %c6, %c0_17] : memref<1x20x128xf32, #tpu.memory_space<vmem>>, vector<1x1x128xf32>
    %47 = vector.shape_cast %46 : vector<1x1x128xf32> to vector<1x128xf32>
    %48 = vector.broadcast %45 : vector<4x1xf32> to vector<4x128xf32>
    %49 = vector.broadcast %47 : vector<1x128xf32> to vector<4x128xf32>
    %50 = arith.mulf %48, %49 : vector<4x128xf32>
    %51 = arith.addf %44, %50 : vector<4x128xf32>
    %52 = vector.extract_strided_slice %0 {offsets = [0, 7], sizes = [4, 1], strides = [1, 1]} : vector<4x20xf32> to vector<4x1xf32>
    %c0_18 = arith.constant 0 : index
    %c7 = arith.constant 7 : index
    %c0_19 = arith.constant 0 : index
    %53 = vector.load %arg2[%c0_18, %c7, %c0_19] : memref<1x20x128xf32, #tpu.memory_space<vmem>>, vector<1x1x128xf32>
    %54 = vector.shape_cast %53 : vector<1x1x128xf32> to vector<1x128xf32>
    %55 = vector.broadcast %52 : vector<4x1xf32> to vector<4x128xf32>
    %56 = vector.broadcast %54 : vector<1x128xf32> to vector<4x128xf32>
    %57 = arith.mulf %55, %56 : vector<4x128xf32>
    %58 = arith.addf %51, %57 : vector<4x128xf32>
    %59 = vector.extract_strided_slice %0 {offsets = [0, 8], sizes = [4, 1], strides = [1, 1]} : vector<4x20xf32> to vector<4x1xf32>
    %c0_20 = arith.constant 0 : index
    %c8 = arith.constant 8 : index
    %c0_21 = arith.constant 0 : index
    %60 = vector.load %arg2[%c0_20, %c8, %c0_21] : memref<1x20x128xf32, #tpu.memory_space<vmem>>, vector<1x1x128xf32>
    %61 = vector.shape_cast %60 : vector<1x1x128xf32> to vector<1x128xf32>
    %62 = vector.broadcast %59 : vector<4x1xf32> to vector<4x128xf32>
    %63 = vector.broadcast %61 : vector<1x128xf32> to vector<4x128xf32>
    %64 = arith.mulf %62, %63 : vector<4x128xf32>
    %65 = arith.addf %58, %64 : vector<4x128xf32>
    %66 = vector.extract_strided_slice %0 {offsets = [0, 9], sizes = [4, 1], strides = [1, 1]} : vector<4x20xf32> to vector<4x1xf32>
    %c0_22 = arith.constant 0 : index
    %c9 = arith.constant 9 : index
    %c0_23 = arith.constant 0 : index
    %67 = vector.load %arg2[%c0_22, %c9, %c0_23] : memref<1x20x128xf32, #tpu.memory_space<vmem>>, vector<1x1x128xf32>
    %68 = vector.shape_cast %67 : vector<1x1x128xf32> to vector<1x128xf32>
    %69 = vector.broadcast %66 : vector<4x1xf32> to vector<4x128xf32>
    %70 = vector.broadcast %68 : vector<1x128xf32> to vector<4x128xf32>
    %71 = arith.mulf %69, %70 : vector<4x128xf32>
    %72 = arith.addf %65, %71 : vector<4x128xf32>
    %73 = vector.extract_strided_slice %0 {offsets = [0, 10], sizes = [4, 1], strides = [1, 1]} : vector<4x20xf32> to vector<4x1xf32>
    %c0_24 = arith.constant 0 : index
    %c10 = arith.constant 10 : index
    %c0_25 = arith.constant 0 : index
    %74 = vector.load %arg2[%c0_24, %c10, %c0_25] : memref<1x20x128xf32, #tpu.memory_space<vmem>>, vector<1x1x128xf32>
    %75 = vector.shape_cast %74 : vector<1x1x128xf32> to vector<1x128xf32>
    %76 = vector.broadcast %73 : vector<4x1xf32> to vector<4x128xf32>
    %77 = vector.broadcast %75 : vector<1x128xf32> to vector<4x128xf32>
    %78 = arith.mulf %76, %77 : vector<4x128xf32>
    %79 = arith.addf %72, %78 : vector<4x128xf32>
    %80 = vector.extract_strided_slice %0 {offsets = [0, 11], sizes = [4, 1], strides = [1, 1]} : vector<4x20xf32> to vector<4x1xf32>
    %c0_26 = arith.constant 0 : index
    %c11 = arith.constant 11 : index
    %c0_27 = arith.constant 0 : index
    %81 = vector.load %arg2[%c0_26, %c11, %c0_27] : memref<1x20x128xf32, #tpu.memory_space<vmem>>, vector<1x1x128xf32>
    %82 = vector.shape_cast %81 : vector<1x1x128xf32> to vector<1x128xf32>
    %83 = vector.broadcast %80 : vector<4x1xf32> to vector<4x128xf32>
    %84 = vector.broadcast %82 : vector<1x128xf32> to vector<4x128xf32>
    %85 = arith.mulf %83, %84 : vector<4x128xf32>
    %86 = arith.addf %79, %85 : vector<4x128xf32>
    %87 = vector.extract_strided_slice %0 {offsets = [0, 12], sizes = [4, 1], strides = [1, 1]} : vector<4x20xf32> to vector<4x1xf32>
    %c0_28 = arith.constant 0 : index
    %c12 = arith.constant 12 : index
    %c0_29 = arith.constant 0 : index
    %88 = vector.load %arg2[%c0_28, %c12, %c0_29] : memref<1x20x128xf32, #tpu.memory_space<vmem>>, vector<1x1x128xf32>
    %89 = vector.shape_cast %88 : vector<1x1x128xf32> to vector<1x128xf32>
    %90 = vector.broadcast %87 : vector<4x1xf32> to vector<4x128xf32>
    %91 = vector.broadcast %89 : vector<1x128xf32> to vector<4x128xf32>
    %92 = arith.mulf %90, %91 : vector<4x128xf32>
    %93 = arith.addf %86, %92 : vector<4x128xf32>
    %94 = vector.extract_strided_slice %0 {offsets = [0, 13], sizes = [4, 1], strides = [1, 1]} : vector<4x20xf32> to vector<4x1xf32>
    %c0_30 = arith.constant 0 : index
    %c13 = arith.constant 13 : index
    %c0_31 = arith.constant 0 : index
    %95 = vector.load %arg2[%c0_30, %c13, %c0_31] : memref<1x20x128xf32, #tpu.memory_space<vmem>>, vector<1x1x128xf32>
    %96 = vector.shape_cast %95 : vector<1x1x128xf32> to vector<1x128xf32>
    %97 = vector.broadcast %94 : vector<4x1xf32> to vector<4x128xf32>
    %98 = vector.broadcast %96 : vector<1x128xf32> to vector<4x128xf32>
    %99 = arith.mulf %97, %98 : vector<4x128xf32>
    %100 = arith.addf %93, %99 : vector<4x128xf32>
    %101 = vector.extract_strided_slice %0 {offsets = [0, 14], sizes = [4, 1], strides = [1, 1]} : vector<4x20xf32> to vector<4x1xf32>
    %c0_32 = arith.constant 0 : index
    %c14 = arith.constant 14 : index
    %c0_33 = arith.constant 0 : index
    %102 = vector.load %arg2[%c0_32, %c14, %c0_33] : memref<1x20x128xf32, #tpu.memory_space<vmem>>, vector<1x1x128xf32>
    %103 = vector.shape_cast %102 : vector<1x1x128xf32> to vector<1x128xf32>
    %104 = vector.broadcast %101 : vector<4x1xf32> to vector<4x128xf32>
    %105 = vector.broadcast %103 : vector<1x128xf32> to vector<4x128xf32>
    %106 = arith.mulf %104, %105 : vector<4x128xf32>
    %107 = arith.addf %100, %106 : vector<4x128xf32>
    %108 = vector.extract_strided_slice %0 {offsets = [0, 15], sizes = [4, 1], strides = [1, 1]} : vector<4x20xf32> to vector<4x1xf32>
    %c0_34 = arith.constant 0 : index
    %c15 = arith.constant 15 : index
    %c0_35 = arith.constant 0 : index
    %109 = vector.load %arg2[%c0_34, %c15, %c0_35] : memref<1x20x128xf32, #tpu.memory_space<vmem>>, vector<1x1x128xf32>
    %110 = vector.shape_cast %109 : vector<1x1x128xf32> to vector<1x128xf32>
    %111 = vector.broadcast %108 : vector<4x1xf32> to vector<4x128xf32>
    %112 = vector.broadcast %110 : vector<1x128xf32> to vector<4x128xf32>
    %113 = arith.mulf %111, %112 : vector<4x128xf32>
    %114 = arith.addf %107, %113 : vector<4x128xf32>
    %115 = vector.extract_strided_slice %0 {offsets = [0, 16], sizes = [4, 1], strides = [1, 1]} : vector<4x20xf32> to vector<4x1xf32>
    %c0_36 = arith.constant 0 : index
    %c16 = arith.constant 16 : index
    %c0_37 = arith.constant 0 : index
    %116 = vector.load %arg2[%c0_36, %c16, %c0_37] : memref<1x20x128xf32, #tpu.memory_space<vmem>>, vector<1x1x128xf32>
    %117 = vector.shape_cast %116 : vector<1x1x128xf32> to vector<1x128xf32>
    %118 = vector.broadcast %115 : vector<4x1xf32> to vector<4x128xf32>
    %119 = vector.broadcast %117 : vector<1x128xf32> to vector<4x128xf32>
    %120 = arith.mulf %118, %119 : vector<4x128xf32>
    %121 = arith.addf %114, %120 : vector<4x128xf32>
    %122 = vector.extract_strided_slice %0 {offsets = [0, 17], sizes = [4, 1], strides = [1, 1]} : vector<4x20xf32> to vector<4x1xf32>
    %c0_38 = arith.constant 0 : index
    %c17 = arith.constant 17 : index
    %c0_39 = arith.constant 0 : index
    %123 = vector.load %arg2[%c0_38, %c17, %c0_39] : memref<1x20x128xf32, #tpu.memory_space<vmem>>, vector<1x1x128xf32>
    %124 = vector.shape_cast %123 : vector<1x1x128xf32> to vector<1x128xf32>
    %125 = vector.broadcast %122 : vector<4x1xf32> to vector<4x128xf32>
    %126 = vector.broadcast %124 : vector<1x128xf32> to vector<4x128xf32>
    %127 = arith.mulf %125, %126 : vector<4x128xf32>
    %128 = arith.addf %121, %127 : vector<4x128xf32>
    %129 = vector.extract_strided_slice %0 {offsets = [0, 18], sizes = [4, 1], strides = [1, 1]} : vector<4x20xf32> to vector<4x1xf32>
    %c0_40 = arith.constant 0 : index
    %c18 = arith.constant 18 : index
    %c0_41 = arith.constant 0 : index
    %130 = vector.load %arg2[%c0_40, %c18, %c0_41] : memref<1x20x128xf32, #tpu.memory_space<vmem>>, vector<1x1x128xf32>
    %131 = vector.shape_cast %130 : vector<1x1x128xf32> to vector<1x128xf32>
    %132 = vector.broadcast %129 : vector<4x1xf32> to vector<4x128xf32>
    %133 = vector.broadcast %131 : vector<1x128xf32> to vector<4x128xf32>
    %134 = arith.mulf %132, %133 : vector<4x128xf32>
    %135 = arith.addf %128, %134 : vector<4x128xf32>
    %136 = vector.extract_strided_slice %0 {offsets = [0, 19], sizes = [4, 1], strides = [1, 1]} : vector<4x20xf32> to vector<4x1xf32>
    %c0_42 = arith.constant 0 : index
    %c19 = arith.constant 19 : index
    %c0_43 = arith.constant 0 : index
    %137 = vector.load %arg2[%c0_42, %c19, %c0_43] : memref<1x20x128xf32, #tpu.memory_space<vmem>>, vector<1x1x128xf32>
    %138 = vector.shape_cast %137 : vector<1x1x128xf32> to vector<1x128xf32>
    %139 = vector.broadcast %136 : vector<4x1xf32> to vector<4x128xf32>
    %140 = vector.broadcast %138 : vector<1x128xf32> to vector<4x128xf32>
    %141 = arith.mulf %139, %140 : vector<4x128xf32>
    %142 = arith.addf %135, %141 : vector<4x128xf32>
    %c0_44 = arith.constant 0 : index
    %c0_45 = arith.constant 0 : index
    %143 = memref.load %arg5[%c0_44, %c0_45] : memref<1x1xf32, #tpu.memory_space<smem>>
    %cst = arith.constant 0.000000e+00 : f32
    %144 = vector.broadcast %cst : f32 to vector<4x128xf32>
    %145 = arith.cmpf oge, %142, %144 : vector<4x128xf32>
    %146 = vector.broadcast %143 : f32 to vector<4x128xf32>
    %147 = arith.mulf %146, %142 : vector<4x128xf32>
    %148 = arith.select %145, %142, %147 : vector<4x128xi1>, vector<4x128xf32>
    %c0_46 = arith.constant 0 : index
    %c0_47 = arith.constant 0 : index
    %c0_48 = arith.constant 0 : index
    %149 = vector.load %arg6[%c0_46, %c0_47, %c0_48] : memref<1x4x128xf32, #tpu.memory_space<vmem>>, vector<1x4x128xf32>
    %150 = vector.shape_cast %149 : vector<1x4x128xf32> to vector<4x128xf32>
    %151 = vector.shape_cast %148 : vector<4x128xf32> to vector<1x4x128xf32>
    tpu.vector_store %arg6[%c0_46, %c0_47, %c0_48], %151 {strides = array<i32>} : memref<1x4x128xf32, #tpu.memory_space<vmem>>, vector<1x4x128xf32>,
    return
  }
  func.func @transform_0(%arg0: i32, %arg1: i32) -> (i32, i32, i32) {
    %c0_i32 = arith.constant 0 : i32
    %c0_i32_0 = arith.constant 0 : i32
    return %arg0, %c0_i32, %arg1 : i32, i32, i32
  }
  func.func @transform_1(%arg0: i32, %arg1: i32) -> (i32, i32) {
    %c0_i32 = arith.constant 0 : i32
    %c0_i32_0 = arith.constant 0 : i32
    %c0_i32_1 = arith.constant 0 : i32
    return %c0_i32, %c0_i32_0 : i32, i32
  }
  func.func @transform_2(%arg0: i32, %arg1: i32) -> (i32, i32) {
    %c0_i32 = arith.constant 0 : i32
    %c0_i32_0 = arith.constant 0 : i32
    %c0_i32_1 = arith.constant 0 : i32
    return %c0_i32, %c0_i32_0 : i32, i32
  }
  func.func @transform_3(%arg0: i32, %arg1: i32) -> (i32, i32) {
    %c0_i32 = arith.constant 0 : i32
    %c0_i32_0 = arith.constant 0 : i32
    %c0_i32_1 = arith.constant 0 : i32
    return %c0_i32, %c0_i32_0 : i32, i32
  }
  func.func @transform_4(%arg0: i32, %arg1: i32) -> (i32, i32, i32) {
    %c0_i32 = arith.constant 0 : i32
    %c0_i32_0 = arith.constant 0 : i32
    return %arg0, %c0_i32, %arg1 : i32, i32, i32
  }
}

</mosaic_0001>

<llo_original>
// kernel: conv_unit_forward.1
$region0: #{conv_unit_forward.1}
  #allocation0 [shape = 'u32[]', space=smem, size = 0x4, offset = 0x4, fixed_abs, tag = 'smem constant byte address 0x4 - core index']
  #allocation1 [shape = 'u32[144,128]{1,0:T(1,128)}', space=vmem, size = 0x12000, scoped, tag = 'internal scratch']
  #allocation2 [shape = 'f32[1,1]{1,0:T(1,128)S(6)}', space=smem, size = 0x200, scoped, tag = 'scoped memory for conv_unit_forward.1']
  %s0 = inlined_call_operand.vmem [shape: f32[2,20,128], index: 0, kind: input, shape index: {}]
  %s1 = inlined_call_operand.vmem [shape: f32[4,20], index: 1, kind: input, shape index: {}]
  %s2 = inlined_call_operand.vmem [shape: f32[4,1], index: 2, kind: input, shape index: {}]
  %s3 = inlined_call_operand.<no memory space> [shape: f32[1,1], index: 3, kind: input, shape index: {}]
  %s4 = inlined_call_operand.vmem [shape: f32[2,4,128], index: 4, kind: output, shape index: {}]
  %s5 = sld [smem:[#allocation0]]
  $region49: #{conv_unit_forward.1} parent=0
    _
  %s7 = ssub.s32 1, %s5
  %s8 = scalar_select 0, %s7, %s5
  %9 = sst [smem:[#allocation2]] %s3
  loop: start=0, step=1, limit=4
  $region2: #{conv_unit_forward.1} parent=0 // loop_pre_header
    _
  $region3: #{conv_unit_forward.1} parent=0 // loop_header
    %s11 = sphi 0, %s15
    %p12 = scmp.ge.s32.totalorder %s11, 4
    %s18 = sphi 0, %s30
    %s19 = sphi 0, %s26
    %s20 = sphi 0, %s18
    %s21 = sphi 0, %s19
    %s22 = sphi 0, %s20
    %s23 = sphi 0, %s21
    %s35 = sphi 0, %s37
    %s38 = sphi 0, %s35
    %s39 = sphi 0, %s38
    %s55 = sphi 0, %s39
    %s59 = sphi 0, %s59
    %s61 = sphi 0, %s59
    %s62 = sphi 0, %s61
    %s76 = sphi 0, %s62
    %s80 = sphi 0, %s80
    %s82 = sphi 0, %s80
    %s83 = sphi 0, %s82
    %s97 = sphi 0, %s83
    %s101 = sphi 0, %s101
    %s103 = sphi 0, %s101
    %s104 = sphi 0, %s103
    %s118 = sphi 0, %s104
    %s126 = sphi 0, %s128
    %s129 = sphi 0, %s126
    %s130 = sphi 0, %s129
    %s146 = sphi 0, %s130
  $region4: #{conv_unit_forward.1} parent=0 // loop_header_branch
    %14 = sbr.rel (%p12) target = $region8
  $region5: #{conv_unit_forward.1} parent=0 // loop_body
    %s16 = ssub.s32 %s11, 1
    %s17 = ssub.s32 %s11, 2
    %s24 = sadd.s32 1, %s19
    %p25 = scmp.ge.s32.totalorder %s24, 1
    %s26 = scalar_select %p25, 0, %s24
    %s27 = sadd.s32 1, %s18
    %s28 = scalar_select %p25, %s27, %s18
    %p29 = scmp.ge.s32.totalorder %s28, 2
    %s30 = scalar_select %p29, 0, %s28
    %s31 = ssub.s32 %s18, %s30
    %s32 = ssub.s32 %s19, %s26
    %s33 = sor.u32 %s31, %s32
    %p34 = scmp.eq.s32.totalorder %s33, 0
    %s36 = sadd.s32 %s35, 1
    %s37 = scalar_select %p34, %s35, %s36
    %p40 = pneg %p34
    %p41 = scmp.eq.s32.totalorder %s11, 1
    %p42 = por %p40, %p41
    %p43 = scmp.ne.s32.totalorder %s35, %s38
    %p44 = scmp.eq.s32.totalorder %s11, 0
    %p45 = por %p43, %p44
    %p46 = scmp.ne.s32.totalorder %s35, %s38
    %p47 = scmp.eq.s32.totalorder %s16, 1
    %p48 = por %p46, %p47
    %p49 = scmp.ne.s32.totalorder %s38, %s39
    %p50 = scmp.eq.s32.totalorder %s16, 0
    %p51 = por %p49, %p50
    %p52 = scmp.ne.s32.totalorder %s38, %s39
    %p53 = scmp.eq.s32.totalorder %s17, 1
    %p54 = por %p52, %p53
    %p56 = scmp.ne.s32.totalorder %s39, %s55
    %p57 = scmp.eq.s32.totalorder %s17, 0
    %p58 = por %p56, %p57
    %s60 = sadd.s32 %s59, 1
    %p63 = scmp.eq.s32.totalorder %s11, 1
    %p64 = scmp.ne.s32.totalorder %s59, %s61
    %p65 = scmp.eq.s32.totalorder %s11, 0
    %p66 = por %p64, %p65
    %p67 = scmp.ne.s32.totalorder %s59, %s61
    %p68 = scmp.eq.s32.totalorder %s16, 1
    %p69 = por %p67, %p68
    %p70 = scmp.ne.s32.totalorder %s61, %s62
    %p71 = scmp.eq.s32.totalorder %s16, 0
    %p72 = por %p70, %p71
    %p73 = scmp.ne.s32.totalorder %s61, %s62
    %p74 = scmp.eq.s32.totalorder %s17, 1
    %p75 = por %p73, %p74
    %p77 = scmp.ne.s32.totalorder %s62, %s76
    %p78 = scmp.eq.s32.totalorder %s17, 0
    %p79 = por %p77, %p78
    %s81 = sadd.s32 %s80, 1
    %p84 = scmp.eq.s32.totalorder %s11, 1
    %p85 = scmp.ne.s32.totalorder %s80, %s82
    %p86 = scmp.eq.s32.totalorder %s11, 0
    %p87 = por %p85, %p86
    %p88 = scmp.ne.s32.totalorder %s80, %s82
    %p89 = scmp.eq.s32.totalorder %s16, 1
    %p90 = por %p88, %p89
    %p91 = scmp.ne.s32.totalorder %s82, %s83
    %p92 = scmp.eq.s32.totalorder %s16, 0
    %p93 = por %p91, %p92
    %p94 = scmp.ne.s32.totalorder %s82, %s83
    %p95 = scmp.eq.s32.totalorder %s17, 1
    %p96 = por %p94, %p95
    %p98 = scmp.ne.s32.totalorder %s83, %s97
    %p99 = scmp.eq.s32.totalorder %s17, 0
    %p100 = por %p98, %p99
    %s102 = sadd.s32 %s101, 1
    %p105 = scmp.eq.s32.totalorder %s11, 1
    %p106 = scmp.ne.s32.totalorder %s101, %s103
    %p107 = scmp.eq.s32.totalorder %s11, 0
    %p108 = por %p106, %p107
    %p109 = scmp.ne.s32.totalorder %s101, %s103
    %p110 = scmp.eq.s32.totalorder %s16, 1
    %p111 = por %p109, %p110
    %p112 = scmp.ne.s32.totalorder %s103, %s104
    %p113 = scmp.eq.s32.totalorder %s16, 0
    %p114 = por %p112, %p113
    %p115 = scmp.ne.s32.totalorder %s103, %s104
    %p116 = scmp.eq.s32.totalorder %s17, 1
    %p117 = por %p115, %p116
    %p119 = scmp.ne.s32.totalorder %s104, %s118
    %p120 = scmp.eq.s32.totalorder %s17, 0
    %p121 = por %p119, %p120
    %s122 = ssub.s32 %s18, %s30
    %s123 = ssub.s32 %s19, %s26
    %s124 = sor.u32 %s122, %s123
    %p125 = scmp.eq.s32.totalorder %s124, 0
    %s127 = sadd.s32 %s126, 1
    %s128 = scalar_select %p125, %s126, %s127
    %p131 = pneg %p125
    %p132 = scmp.eq.s32.totalorder %s11, 1
    %p133 = por %p131, %p132
    %p134 = scmp.ne.s32.totalorder %s126, %s129
    %p135 = scmp.eq.s32.totalorder %s11, 0
    %p136 = por %p134, %p135
    %p137 = scmp.ne.s32.totalorder %s126, %s129
    %p138 = scmp.eq.s32.totalorder %s16, 1
    %p139 = por %p137, %p138
    %p140 = scmp.ne.s32.totalorder %s129, %s130
    %p141 = scmp.eq.s32.totalorder %s16, 0
    %p142 = por %p140, %p141
    %p143 = scmp.ne.s32.totalorder %s129, %s130
    %p144 = scmp.eq.s32.totalorder %s17, 1
    %p145 = por %p143, %p144
    %p147 = scmp.ne.s32.totalorder %s130, %s146
    %p148 = scmp.eq.s32.totalorder %s17, 0
    %p149 = por %p147, %p148
    %p150 = scmp.le.s32.totalorder 1, %s11
    %p151 = scmp.lt.s32.totalorder %s11, 3
    %p152 = pnand %p150, %p151
    %p153 = pneg %p152
    // Predicated region
    $region9: #{conv_unit_forward.1} parent=5 // pred_check
      _
    $region10: #{conv_unit_forward.1} parent=5 // pred_check_branch
      %155 = sbr.rel (%p152) target = $region12
    $region11: #{conv_unit_forward.1} parent=5 // pred_region
      %s156 = ssub.s32 %s11, 1
      // Predicated region
      $region13: #{conv_unit_forward.1} parent=11 // pred_check
        %p157 = pneg %p72
      $region14: #{conv_unit_forward.1} parent=11 // pred_check_branch
        %159 = sbr.rel (%p157) target = $region16
      $region15: #{conv_unit_forward.1} parent=11 // pred_region
        _
      $region16: #{conv_unit_forward.1} parent=11 // pred_fallthru
        _
      // Predicated region
      $region17: #{conv_unit_forward.1} parent=11 // pred_check
        %p160 = pneg %p93
      $region18: #{conv_unit_forward.1} parent=11 // pred_check_branch
        %162 = sbr.rel (%p160) target = $region20
      $region19: #{conv_unit_forward.1} parent=11 // pred_region
        _
      $region20: #{conv_unit_forward.1} parent=11 // pred_fallthru
        _
      // Predicated region
      $region21: #{conv_unit_forward.1} parent=11 // pred_check
        %p163 = pneg %p114
      $region22: #{conv_unit_forward.1} parent=11 // pred_check_branch
        %165 = sbr.rel (%p163) target = $region24
      $region23: #{conv_unit_forward.1} parent=11 // pred_region
        _
      $region24: #{conv_unit_forward.1} parent=11 // pred_fallthru
        _
    $region12: #{conv_unit_forward.1} parent=5 // pred_fallthru
      _
    %p166 = scmp.lt.s32.totalorder %s11, 2
    // Predicated region
    $region25: #{conv_unit_forward.1} parent=5 // pred_check
      %p167 = pneg %p166
    $region26: #{conv_unit_forward.1} parent=5 // pred_check_branch
      %169 = sbr.rel (%p167) target = $region28
    $region27: #{conv_unit_forward.1} parent=5 // pred_region
      // Predicated region
      $region29: #{conv_unit_forward.1} parent=27 // pred_check
        %p170 = pneg %p45
      $region30: #{conv_unit_forward.1} parent=27 // pred_check_branch
        %172 = sbr.rel (%p170) target = $region32
      $region31: #{conv_unit_forward.1} parent=27 // pred_region
        %p173 = scmp.lt.s32.totalorder %s18, 1
        %s174 = scalar_select %p173, %s18, 1
        %p175 = scmp.lt.s32.totalorder %s19, 0
        %s176 = scalar_select %p175, %s19, 0
        %s177 = smul.addr %s174, 3
        %s178 = sadd.s32 %s176, %s177
        %s179 = smul.addr %s178, 8
        %s180 = scalar_lea.vmem %s0, %s179
      $region32: #{conv_unit_forward.1} parent=27 // pred_fallthru
        _
    $region28: #{conv_unit_forward.1} parent=5 // pred_fallthru
      _
    %p181 = scmp.le.s32.totalorder 1, %s11
    %p182 = scmp.lt.s32.totalorder %s11, 3
    %p183 = pnand %p181, %p182
    %p184 = pneg %p183
    // Predicated region
    $region33: #{conv_unit_forward.1} parent=5 // pred_check
      _
    $region34: #{conv_unit_forward.1} parent=5 // pred_check_branch
      %186 = sbr.rel (%p183) target = $region36
    $region35: #{conv_unit_forward.1} parent=5 // pred_region
      %s187 = ssub.s32 %s11, 1
      %p188 = scmp.lt.s32.totalorder %s20, 1
      %s189 = scalar_select %p188, %s20, 1
      %p190 = scmp.lt.s32.totalorder %s21, 0
      %s191 = scalar_select %p190, %s21, 0
      %s192 = smul.addr %s189, 3
      %s193 = sadd.s32 %s191, %s192
      %s194 = smul.addr %s193, 8
      %s195 = scalar_lea.vmem %s0, %s194
      %p196 = pneg %p51
      %p197 = pneg %p48
      %p198 = pneg %p72
      %p199 = pneg %p69
      %p200 = pneg %p93
      %p201 = pneg %p90
      %p202 = pneg %p114
      %p203 = pneg %p111
      %p204 = pneg %p142
      %p205 = pneg %p139
      %p206 = scmp.lt.s32.totalorder %s20, 1
      %s207 = scalar_select %p206, %s20, 1
      %p208 = scmp.lt.s32.totalorder %s21, 0
      %s209 = scalar_select %p208, %s21, 0
      %s210 = sadd.s32 %s209, %s207
      %s211 = smul.addr %s210, 4
      %s212 = scalar_lea.vmem %s4, %s211
      %p213 = scmp.lt.s32.totalorder %s20, 1
      %s214 = scalar_select %p213, %s20, 1
      %p215 = scmp.lt.s32.totalorder %s21, 0
      %s216 = scalar_select %p215, %s21, 0
      %s217 = smul.addr %s214, 3
      %s218 = sadd.s32 %s216, %s217
      %s219 = smul.addr %s218, 8
      %s220 = scalar_lea.vmem %s0, %s219
      %p221 = scmp.lt.s32.totalorder %s20, 1
      %s222 = scalar_select %p221, %s20, 1
      %p223 = scmp.lt.s32.totalorder %s21, 0
      %s224 = scalar_select %p223, %s21, 0
      %s225 = sadd.s32 %s224, %s222
      %s226 = smul.addr %s225, 4
      %s227 = scalar_lea.vmem %s4, %s226
      %v228 = vld [vmem:[%s1] sm:$0xf]
      %v229 = vld [vmem:[%s2] sm:$0xf]
      %v230 = vld [vmem:[%s220] sm:$0x1]
      %232 = vset.pattern.permute.xlu0 0
      %233 = vperm.xlu0 %232, %v228
      %v234 = vpop.permute.xlu0 %233
      %v236 = vlaneseq
      %v237 = vshrl.u32 %v236, 7
      %v238 = vsub.s32 0, %v237
      %v239 = vrot.slane %v230, %v238
      %v240 = vmul.f32 %v234, %v239
      %242 = vset.pattern.permute.xlu0 0
      %243 = vperm.xlu0 %242, %v229
      %v244 = vpop.permute.xlu0 %243
      %v246 = vadd.f32 %v244, %v240
      %v247 = vld [vmem:[%s220 + $0x1] sm:$0x1]
      %248 = vset.pattern.permute.xlu0 1
      %249 = vperm.xlu0 %248, %v228
      %v250 = vpop.permute.xlu0 %249
      %v252 = vlaneseq
      %v253 = vshrl.u32 %v252, 7
      %v254 = vsub.s32 0, %v253
      %v255 = vrot.slane %v247, %v254
      %v256 = vmul.f32 %v250, %v255
      %v257 = vadd.f32 %v246, %v256
      %v258 = vld [vmem:[%s220 + $0x2] sm:$0x1]
      %259 = vset.pattern.permute.xlu0 2
      %260 = vperm.xlu0 %259, %v228
      %v261 = vpop.permute.xlu0 %260
      %v263 = vlaneseq
      %v264 = vshrl.u32 %v263, 7
      %v265 = vsub.s32 0, %v264
      %v266 = vrot.slane %v258, %v265
      %v267 = vmul.f32 %v261, %v266
      %v268 = vadd.f32 %v257, %v267
      %v269 = vld [vmem:[%s220 + $0x3] sm:$0x1]
      %270 = vset.pattern.permute.xlu0 3
      %271 = vperm.xlu0 %270, %v228
      %v272 = vpop.permute.xlu0 %271
      %v274 = vlaneseq
      %v275 = vshrl.u32 %v274, 7
      %v276 = vsub.s32 0, %v275
      %v277 = vrot.slane %v269, %v276
      %v278 = vmul.f32 %v272, %v277
      %v279 = vadd.f32 %v268, %v278
      %v280 = vld [vmem:[%s220 + $0x4] sm:$0x1]
      %281 = vset.pattern.permute.xlu0 4
      %282 = vperm.xlu0 %281, %v228
      %v283 = vpop.permute.xlu0 %282
      %v285 = vlaneseq
      %v286 = vshrl.u32 %v285, 7
      %v287 = vsub.s32 0, %v286
      %v288 = vrot.slane %v280, %v287
      %v289 = vmul.f32 %v283, %v288
      %v290 = vadd.f32 %v279, %v289
      %v291 = vld [vmem:[%s220 + $0x5] sm:$0x1]
      %292 = vset.pattern.permute.xlu0 5
      %293 = vperm.xlu0 %292, %v228
      %v294 = vpop.permute.xlu0 %293
      %v296 = vlaneseq
      %v297 = vshrl.u32 %v296, 7
      %v298 = vsub.s32 0, %v297
      %v299 = vrot.slane %v291, %v298
      %v300 = vmul.f32 %v294, %v299
      %v301 = vadd.f32 %v290, %v300
      %v302 = vld [vmem:[%s220 + $0x6] sm:$0x1]
      %303 = vset.pattern.permute.xlu0 6
      %304 = vperm.xlu0 %303, %v228
      %v305 = vpop.permute.xlu0 %304
      %v307 = vlaneseq
      %v308 = vshrl.u32 %v307, 7
      %v309 = vsub.s32 0, %v308
      %v310 = vrot.slane %v302, %v309
      %v311 = vmul.f32 %v305, %v310
      %v312 = vadd.f32 %v301, %v311
      %v313 = vld [vmem:[%s220 + $0x7] sm:$0x1]
      %314 = vset.pattern.permute.xlu0 7
      %315 = vperm.xlu0 %314, %v228
      %v316 = vpop.permute.xlu0 %315
      %v318 = vlaneseq
      %v319 = vshrl.u32 %v318, 7
      %v320 = vsub.s32 0, %v319
      %v321 = vrot.slane %v313, %v320
      %v322 = vmul.f32 %v316, %v321
      %v323 = vadd.f32 %v312, %v322
      %v324 = vld [vmem:[%s220 + $0x8] sm:$0x1]
      %325 = vset.pattern.permute.xlu0 8
      %326 = vperm.xlu0 %325, %v228
      %v327 = vpop.permute.xlu0 %326
      %v329 = vlaneseq
      %v330 = vshrl.u32 %v329, 7
      %v331 = vsub.s32 0, %v330
      %v332 = vrot.slane %v324, %v331
      %v333 = vmul.f32 %v327, %v332
      %v334 = vadd.f32 %v323, %v333
      %v335 = vld [vmem:[%s220 + $0x9] sm:$0x1]
      %336 = vset.pattern.permute.xlu0 9
      %337 = vperm.xlu0 %336, %v228
      %v338 = vpop.permute.xlu0 %337
      %v340 = vlaneseq
      %v341 = vshrl.u32 %v340, 7
      %v342 = vsub.s32 0, %v341
      %v343 = vrot.slane %v335, %v342
      %v344 = vmul.f32 %v338, %v343
      %v345 = vadd.f32 %v334, %v344
      %v346 = vld [vmem:[%s220 + $0xa] sm:$0x1]
      %347 = vset.pattern.permute.xlu0 10
      %348 = vperm.xlu0 %347, %v228
      %v349 = vpop.permute.xlu0 %348
      %v351 = vlaneseq
      %v352 = vshrl.u32 %v351, 7
      %v353 = vsub.s32 0, %v352
      %v354 = vrot.slane %v346, %v353
      %v355 = vmul.f32 %v349, %v354
      %v356 = vadd.f32 %v345, %v355
      %v357 = vld [vmem:[%s220 + $0xb] sm:$0x1]
      %358 = vset.pattern.permute.xlu0 11
      %359 = vperm.xlu0 %358, %v228
      %v360 = vpop.permute.xlu0 %359
      %v362 = vlaneseq
      %v363 = vshrl.u32 %v362, 7
      %v364 = vsub.s32 0, %v363
      %v365 = vrot.slane %v357, %v364
      %v366 = vmul.f32 %v360, %v365
      %v367 = vadd.f32 %v356, %v366
      %v368 = vld [vmem:[%s220 + $0xc] sm:$0x1]
      %369 = vset.pattern.permute.xlu0 12
      %370 = vperm.xlu0 %369, %v228
      %v371 = vpop.permute.xlu0 %370
      %v373 = vlaneseq
      %v374 = vshrl.u32 %v373, 7
      %v375 = vsub.s32 0, %v374
      %v376 = vrot.slane %v368, %v375
      %v377 = vmul.f32 %v371, %v376
      %v378 = vadd.f32 %v367, %v377
      %v379 = vld [vmem:[%s220 + $0xd] sm:$0x1]
      %380 = vset.pattern.permute.xlu0 13
      %381 = vperm.xlu0 %380, %v228
      %v382 = vpop.permute.xlu0 %381
      %v384 = vlaneseq
      %v385 = vshrl.u32 %v384, 7
      %v386 = vsub.s32 0, %v385
      %v387 = vrot.slane %v379, %v386
      %v388 = vmul.f32 %v382, %v387
      %v389 = vadd.f32 %v378, %v388
      %v390 = vld [vmem:[%s220 + $0xe] sm:$0x1]
      %391 = vset.pattern.permute.xlu0 14
      %392 = vperm.xlu0 %391, %v228
      %v393 = vpop.permute.xlu0 %392
      %v395 = vlaneseq
      %v396 = vshrl.u32 %v395, 7
      %v397 = vsub.s32 0, %v396
      %v398 = vrot.slane %v390, %v397
      %v399 = vmul.f32 %v393, %v398
      %v400 = vadd.f32 %v389, %v399
      %v401 = vld [vmem:[%s220 + $0xf] sm:$0x1]
      %402 = vset.pattern.permute.xlu0 15
      %403 = vperm.xlu0 %402, %v228
      %v404 = vpop.permute.xlu0 %403
      %v406 = vlaneseq
      %v407 = vshrl.u32 %v406, 7
      %v408 = vsub.s32 0, %v407
      %v409 = vrot.slane %v401, %v408
      %v410 = vmul.f32 %v404, %v409
      %v411 = vadd.f32 %v400, %v410
      %v412 = vld [vmem:[%s220 + $0x10] sm:$0x1]
      %413 = vset.pattern.permute.xlu0 16
      %414 = vperm.xlu0 %413, %v228
      %v415 = vpop.permute.xlu0 %414
      %v417 = vlaneseq
      %v418 = vshrl.u32 %v417, 7
      %v419 = vsub.s32 0, %v418
      %v420 = vrot.slane %v412, %v419
      %v421 = vmul.f32 %v415, %v420
      %v422 = vadd.f32 %v411, %v421
      %v423 = vld [vmem:[%s220 + $0x11] sm:$0x1]
      %424 = vset.pattern.permute.xlu0 17
      %425 = vperm.xlu0 %424, %v228
      %v426 = vpop.permute.xlu0 %425
      %v428 = vlaneseq
      %v429 = vshrl.u32 %v428, 7
      %v430 = vsub.s32 0, %v429
      %v431 = vrot.slane %v423, %v430
      %v432 = vmul.f32 %v426, %v431
      %v433 = vadd.f32 %v422, %v432
      %v434 = vld [vmem:[%s220 + $0x12] sm:$0x1]
      %435 = vset.pattern.permute.xlu0 18
      %436 = vperm.xlu0 %435, %v228
      %v437 = vpop.permute.xlu0 %436
      %v439 = vlaneseq
      %v440 = vshrl.u32 %v439, 7
      %v441 = vsub.s32 0, %v440
      %v442 = vrot.slane %v434, %v441
      %v443 = vmul.f32 %v437, %v442
      %v444 = vadd.f32 %v433, %v443
      %v445 = vld [vmem:[%s220 + $0x13] sm:$0x1]
      %446 = vset.pattern.permute.xlu0 19
      %447 = vperm.xlu0 %446, %v228
      %v448 = vpop.permute.xlu0 %447
      %v450 = vlaneseq
      %v451 = vshrl.u32 %v450, 7
      %v452 = vsub.s32 0, %v451
      %v453 = vrot.slane %v445, %v452
      %v454 = vmul.f32 %v448, %v453
      %v455 = vadd.f32 %v444, %v454
      %s456 = sld [smem:[#allocation2]]
      %vm457 = vcmp.ge.f32.partialorder %v455, 0.0
      %v458 = vstv %s456
      %v459 = vmul.f32 %v458, %v455
      %v460 = vsel %vm457, %v455, %v459
      %461 = vst [vmem:[%s227] sm:$0xf] %v460
      %p462 = scmp.lt.s32.totalorder %s20, 1
      %s463 = scalar_select %p462, %s20, 1
      %p464 = scmp.lt.s32.totalorder %s21, 0
      %s465 = scalar_select %p464, %s21, 0
      %s466 = sadd.s32 %s465, %s463
      %s467 = smul.addr %s466, 4
      %s468 = scalar_lea.vmem %s4, %s467
      // Predicated region
      $region37: #{conv_unit_forward.1} parent=35 // pred_check
        %p469 = pneg %p139
      $region38: #{conv_unit_forward.1} parent=35 // pred_check_branch
        %471 = sbr.rel (%p469) target = $region40
      $region39: #{conv_unit_forward.1} parent=35 // pred_region
        _
      $region40: #{conv_unit_forward.1} parent=35 // pred_fallthru
        _
    $region36: #{conv_unit_forward.1} parent=5 // pred_fallthru
      _
    %p472 = scmp.le.s32.totalorder 2, %s11
    // Predicated region
    $region41: #{conv_unit_forward.1} parent=5 // pred_check
      %p473 = pneg %p472
    $region42: #{conv_unit_forward.1} parent=5 // pred_check_branch
      %475 = sbr.rel (%p473) target = $region44
    $region43: #{conv_unit_forward.1} parent=5 // pred_region
      %s476 = ssub.s32 %s11, 2
      // Predicated region
      $region45: #{conv_unit_forward.1} parent=43 // pred_check
        %p477 = pneg %p145
      $region46: #{conv_unit_forward.1} parent=43 // pred_check_branch
        %479 = sbr.rel (%p477) target = $region48
      $region47: #{conv_unit_forward.1} parent=43 // pred_region
        %p480 = scmp.lt.s32.totalorder %s22, 1
        %s481 = scalar_select %p480, %s22, 1
        %p482 = scmp.lt.s32.totalorder %s23, 0
        %s483 = scalar_select %p482, %s23, 0
        %s484 = sadd.s32 %s483, %s481
        %s485 = smul.addr %s484, 4
        %s486 = scalar_lea.vmem %s4, %s485
      $region48: #{conv_unit_forward.1} parent=43 // pred_fallthru
        _
    $region44: #{conv_unit_forward.1} parent=5 // pred_fallthru
      _
  $region6: #{conv_unit_forward.1} parent=0 // loop_footer
    %s15 = sadd.s32 1, %s11
  $region7: #{conv_unit_forward.1} parent=0 // loop_footer_branch
    %10 = sbr.rel target = $region3
  $region8: #{conv_unit_forward.1} parent=0 // loop_exit
    _

</llo_original>
